<compile_context>
chip_gen: v6e
topology: v6e:2x2x1
jax: 0.10.0
libtpu: 0.0.40
codegen_flags: <defaults>
</compile_context>

<pallas_src>
import numpy as np
import jax
import jax.numpy as jnp
from jax.experimental import pallas as pl
from jax.experimental.pallas import tpu as pltpu


_VMEM_BLOCK_BUDGET = 2 * 1024 * 1024  # bytes per output block (double-buffered)


def _sublane_pack(dtype) -> int:
    """Sublane tiling granularity for the dtype (f32:8, bf16:16, int8:32)."""
    return {4: 8, 2: 16, 1: 32}.get(jnp.dtype(dtype).itemsize, 8)


def _pick_h_tile(H, row_bytes, pack):
    """Largest divisor of H that is a multiple of `pack` and fits the VMEM
    budget; falls back to the full dim (always a legal block extent)."""
    max_rows = max(1, _VMEM_BLOCK_BUDGET // max(1, row_bytes))
    if H <= max_rows or H % pack != 0:
        return H
    fitting = [t for t in range(pack, H + 1, pack) if H % t == 0 and t <= max_rows]
    return max(fitting) if fitting else pack


def _make_copy_kernel(fold_h, fold_w, rH, rW):
    def kernel(x_ref, o_ref):
        if not fold_h and not fold_w:
            # Fast path: plain lane-dense block copy (replication is on the grid).
            o_ref[...] = x_ref[...]
            return
        v = x_ref[...]
        if fold_h:
            v = jnp.concatenate([v] * rH, axis=-2)
        if fold_w:
            v = jnp.concatenate([v] * rW, axis=-1)
        o_ref[...] = v  # one contiguous full-width store per row band
    return kernel


def tile_pallas(x, reps, match_shape_exactly=True):
    """JAX/Pallas equivalent of Tile(reps, match_shape_exactly).forward(x)."""
    reps = list(reps)
    assert (not match_shape_exactly) or (x.ndim == len(reps)), (x.shape, reps)

    # Rank normalization (same as the torch module / np.tile).
    nd = max(x.ndim, len(reps))
    reps = [1] * (nd - len(reps)) + reps
    x = x.reshape((1,) * (nd - x.ndim) + x.shape)
    target_out_shape = tuple(s * r for s, r in zip(x.shape, reps))

    # The kernel wants >= 2 dims (sublane, lane); lift low-rank inputs.
    if nd < 2:
        x = x.reshape((1,) * (2 - nd) + x.shape)
        reps = [1] * (2 - nd) + reps
        nd = 2

    in_shape = x.shape
    out_shape = tuple(s * r for s, r in zip(in_shape, reps))
    H, W = in_shape[-2], in_shape[-1]
    rH, rW = reps[-2], reps[-1]
    lead_shape = in_shape[:-2]
    lead_reps = tuple(reps[:-2])
    n_lead = nd - 2

    itemsize = jnp.dtype(x.dtype).itemsize
    pack = _sublane_pack(x.dtype)
    lead_elems = int(np.prod(lead_shape, dtype=np.int64)) if lead_shape else 1

    # W replication: grid-level if the W-wide store is lane-dense (W % 128 == 0),
    # otherwise fold rW into the block so the store spans the full output width.
    fold_w = (rW > 1) and (W % 128 != 0)
    out_w = W * rW if fold_w else W

    # H replication: grid-level unless H cannot be legally sub-tiled (then the
    # output block must span the full H*rH extent).
    fold_h = (rH > 1) and (H % pack != 0)
    if fold_h:
        h_tile = H
        out_h = H * rH
        nH = 1
    else:
        row_bytes = lead_elems * out_w * itemsize
        h_tile = _pick_h_tile(H, row_bytes, pack)
        out_h = h_tile
        nH = H // h_tile

    # TODO(synk): very large leading dims are not sub-tiled (block covers the
    # full leading extent); tile them too if prod(lead) * h_tile * W gets big.

    rh_grid = 1 if fold_h else rH
    rw_grid = 1 if fold_w else rW

    # Spatial sub-tile axis outermost ("parallel"), replica axes innermost.
    grid = (nH,) + lead_reps + (rh_grid, rw_grid)
    dim_sems = ("parallel",) * (1 + n_lead) + ("arbitrary", "arbitrary")

    in_block = lead_shape + (h_tile, W)
    out_block = lead_shape + (out_h, out_w)

    def in_index_map(*idx):
        h = idx[0]
        return (0,) * n_lead + (h, 0)

    def out_index_map(*idx):
        h = idx[0]
        lead = idx[1:1 + n_lead]
        ah = idx[1 + n_lead]
        aw = idx[2 + n_lead]
        return tuple(lead) + (ah * nH + h, aw)

    kernel = _make_copy_kernel(fold_h, fold_w, rH, rW)

    out = pl.pallas_call(
        kernel,
        out_shape=jax.ShapeDtypeStruct(out_shape, x.dtype),
        grid_spec=pltpu.PrefetchScalarGridSpec(
            num_scalar_prefetch=0,
            grid=grid,
            in_specs=[pl.BlockSpec(in_block, in_index_map)],
            out_specs=pl.BlockSpec(out_block, out_index_map),
        ),
        compiler_params=pltpu.CompilerParams(dimension_semantics=dim_sems),
    )(x)

    return out.reshape(target_out_shape)


if __name__ == "__main__":
    key = jax.random.PRNGKey(0)

    # Small NCHW input, reps matching ndim (match_shape_exactly=True).
    x = jax.random.normal(key, (2, 4, 16, 16), dtype=jnp.float32)
    reps = (1, 2, 2, 2)
    y = jax.block_until_ready(tile_pallas(x, reps, match_shape_exactly=True))
    ref = np.tile(np.asarray(x), reps)
    assert y.shape == ref.shape, (y.shape, ref.shape)
    np.testing.assert_allclose(np.asarray(y), ref, rtol=0, atol=0)

    # Rep-padding path (match_shape_exactly=False, reps=(2,)).
    x2 = jax.random.normal(jax.random.PRNGKey(1), (4, 8, 16), dtype=jnp.float32)
    y2 = jax.block_until_ready(tile_pallas(x2, (2,), match_shape_exactly=False))
    ref2 = np.tile(np.asarray(x2), (2,))
    np.testing.assert_allclose(np.asarray(y2), ref2, rtol=0, atol=0)

    # Lane-dense fast path (W % 128 == 0): pure-copy kernel, rW on the grid.
    x3 = jax.random.normal(jax.random.PRNGKey(2), (2, 16, 128), dtype=jnp.float32)
    y3 = jax.block_until_ready(tile_pallas(x3, (2, 2, 2), match_shape_exactly=True))
    ref3 = np.tile(np.asarray(x3), (2, 2, 2))
    np.testing.assert_allclose(np.asarray(y3), ref3, rtol=0, atol=0)

    print("KERNEL_OK")
</pallas_src>

<mosaic_0001>
module attributes {stable_mosaic.version = 11 : i64} {
  func.func @kernel(%arg0: i32, %arg1: i32, %arg2: i32, %arg3: i32, %arg4: i32, %arg5: memref<2x4x16x16xf32, #tpu.memory_space<vmem>>, %arg6: memref<2x4x16x32xf32, #tpu.memory_space<vmem>>) attributes {dimension_semantics = [#tpu.dimension_semantics<parallel>, #tpu.dimension_semantics<parallel>, #tpu.dimension_semantics<parallel>, #tpu.dimension_semantics<arbitrary>, #tpu.dimension_semantics<arbitrary>], iteration_bounds = array<i64: 1, 1, 2, 2, 1>, scalar_prefetch = 0 : i64, scratch_operands = 0 : i64, tpu.core_type = #tpu.core_type<tc>, window_params = [{transform_indices = @transform_0, window_bounds = array<i64: 2, 4, 16, 16>}, {transform_indices = @transform_1, window_bounds = array<i64: 2, 4, 16, 32>}]} {
    %c0 = arith.constant 0 : index
    %c0_0 = arith.constant 0 : index
    %c0_1 = arith.constant 0 : index
    %c0_2 = arith.constant 0 : index
    %0 = vector.load %arg5[%c0, %c0_0, %c0_1, %c0_2] : memref<2x4x16x16xf32, #tpu.memory_space<vmem>>, vector<2x4x16x16xf32>
    %1 = tpu.concatenate %0, %0 in 3 : vector<2x4x16x16xf32>, vector<2x4x16x16xf32> -> vector<2x4x16x32xf32>
    %c0_3 = arith.constant 0 : index
    %c0_4 = arith.constant 0 : index
    %c0_5 = arith.constant 0 : index
    %c0_6 = arith.constant 0 : index
    %2 = vector.load %arg6[%c0_3, %c0_4, %c0_5, %c0_6] : memref<2x4x16x32xf32, #tpu.memory_space<vmem>>, vector<2x4x16x32xf32>
    tpu.vector_store %arg6[%c0_3, %c0_4, %c0_5, %c0_6], %1 {strides = array<i32>} : memref<2x4x16x32xf32, #tpu.memory_space<vmem>>, vector<2x4x16x32xf32>,
    return
  }
  func.func @transform_0(%arg0: i32, %arg1: i32, %arg2: i32, %arg3: i32, %arg4: i32) -> (i32, i32, i32, i32) {
    %c0_i32 = arith.constant 0 : i32
    %c0_i32_0 = arith.constant 0 : i32
    %c0_i32_1 = arith.constant 0 : i32
    %c0_i32_2 = arith.constant 0 : i32
    return %c0_i32, %c0_i32_0, %arg0, %c0_i32_1 : i32, i32, i32, i32
  }
  func.func @transform_1(%arg0: i32, %arg1: i32, %arg2: i32, %arg3: i32, %arg4: i32) -> (i32, i32, i32, i32) {
    %c1_i32 = arith.constant 1 : i32
    %0 = arith.muli %arg3, %c1_i32 : i32
    %1 = arith.addi %0, %arg0 : i32
    %c0_i32 = arith.constant 0 : i32
    return %arg1, %arg2, %1, %arg4 : i32, i32, i32, i32
  }
}

</mosaic_0001>

<llo_original>
// kernel: tpu_custom_call.1
$region0: #{tpu_custom_call.1}
  #allocation0 [shape = 'u32[]', space=smem, size = 0x4, offset = 0x4, fixed_abs, tag = 'smem constant byte address 0x4 - core index']
  #allocation1 [shape = 'u32[144,128]{1,0:T(1,128)}', space=vmem, size = 0x12000, scoped, tag = 'internal scratch']
  #allocation6 [shape = 's32[]', space=sflag, size = 0x4, offset = 0, fixed_abs, tag = 'sflag constant byte address 0x0 - dummy sync flag']
  %s0 = inlined_call_operand.hbm [shape: f32[2,4,16,16], index: 0, kind: input, shape index: {}]
  %s1 = inlined_call_operand.hbm [shape: f32[2,8,32,32], index: 1, kind: output, shape index: {}]
  %s2 = sld [smem:[#allocation0]]
  $region41: #{tpu_custom_call.1} parent=0
    _
  %s4 = ssub.s32 1, %s2
  %s5 = scalar_select 0, %s4, %s2
  $region1: #{tpu_custom_call.1} parent=0
    #allocation2 [shape = 'u8[65536]{0}', space=vmem, size = 0x10000, scoped, tag = 'input window, operand 0, single buffered']
    #allocation3 [shape = 's32[2]{0}', space=sflag, size = 0x8, scoped, tag = 'scoped memory for tpu_custom_call.1']
    #allocation4 [shape = 's32[2]{0}', space=sflag, size = 0x8, scoped, tag = 'scoped memory for tpu_custom_call.1']
    #allocation5 [shape = 'u8[131072]{0}', space=vmem, size = 0x20000, scoped, tag = 'output window, operand 0']
    %6 = vsyncpa [#allocation3], 0
    %7 = vsyncpa [#allocation4], 0
    %s8 = scalar_lea.sflag [#allocation4], 1
    %9 = vsyncpa %s8, 0
    loop: start=0, step=1, limit=6
    $region2: #{tpu_custom_call.1} parent=1 // loop_pre_header
      _
    $region3: #{tpu_custom_call.1} parent=1 // loop_header
      %s11 = sphi 0, %s15
      %p12 = scmp.ge.s32.totalorder %s11, 6
      %s18 = sphi 0, %s51
      %s19 = sphi 0, %s47
      %s20 = sphi 0, %s43
      %s21 = sphi 0, %s39
      %s22 = sphi 0, %s35
      %s23 = sphi 0, %s18
      %s24 = sphi 0, %s19
      %s25 = sphi 0, %s20
      %s26 = sphi 0, %s21
      %s27 = sphi 0, %s22
      %s28 = sphi 0, %s23
      %s29 = sphi 0, %s24
      %s30 = sphi 0, %s25
      %s31 = sphi 0, %s26
      %s32 = sphi 0, %s27
      %s54 = sphi 0, %s56
      %s57 = sphi 0, %s54
      %s58 = sphi 0, %s57
      %s74 = sphi 0, %s58
      %s88 = sphi 0, %s90
      %s91 = sphi 0, %s88
      %s92 = sphi 0, %s91
      %s108 = sphi 0, %s92
    $region4: #{tpu_custom_call.1} parent=1 // loop_header_branch
      %14 = sbr.rel (%p12) target = $region8
    $region5: #{tpu_custom_call.1} parent=1 // loop_body
      %s16 = ssub.s32 %s11, 1
      %s17 = ssub.s32 %s11, 2
      %s33 = sadd.s32 1, %s22
      %p34 = scmp.ge.s32.totalorder %s33, 1
      %s35 = scalar_select %p34, 0, %s33
      %s36 = sadd.s32 1, %s21
      %s37 = scalar_select %p34, %s36, %s21
      %p38 = scmp.ge.s32.totalorder %s37, 2
      %s39 = scalar_select %p38, 0, %s37
      %s40 = sadd.s32 1, %s20
      %s41 = scalar_select %p38, %s40, %s20
      %p42 = scmp.ge.s32.totalorder %s41, 2
      %s43 = scalar_select %p42, 0, %s41
      %s44 = sadd.s32 1, %s19
      %s45 = scalar_select %p42, %s44, %s19
      %p46 = scmp.ge.s32.totalorder %s45, 1
      %s47 = scalar_select %p46, 0, %s45
      %s48 = sadd.s32 1, %s18
      %s49 = scalar_select %p46, %s48, %s18
      %p50 = scmp.ge.s32.totalorder %s49, 1
      %s51 = scalar_select %p50, 0, %s49
      %s52 = ssub.s32 %s18, %s51
      %p53 = scmp.eq.s32.totalorder %s52, 0
      %s55 = sadd.s32 %s54, 1
      %s56 = scalar_select %p53, %s54, %s55
      %p59 = pneg %p53
      %p60 = scmp.eq.s32.totalorder %s11, 3
      %p61 = por %p59, %p60
      %p62 = scmp.ne.s32.totalorder %s54, %s57
      %p63 = scmp.eq.s32.totalorder %s11, 0
      %p64 = por %p62, %p63
      %p65 = scmp.ne.s32.totalorder %s54, %s57
      %p66 = scmp.eq.s32.totalorder %s16, 3
      %p67 = por %p65, %p66
      %p68 = scmp.ne.s32.totalorder %s57, %s58
      %p69 = scmp.eq.s32.totalorder %s16, 0
      %p70 = por %p68, %p69
      %p71 = scmp.ne.s32.totalorder %s57, %s58
      %p72 = scmp.eq.s32.totalorder %s17, 3
      %p73 = por %p71, %p72
      %p75 = scmp.ne.s32.totalorder %s58, %s74
      %p76 = scmp.eq.s32.totalorder %s17, 0
      %p77 = por %p75, %p76
      %s78 = sadd.s32 %s21, %s18
      %s79 = sadd.s32 %s39, %s51
      %s80 = ssub.s32 %s19, %s47
      %s81 = ssub.s32 %s20, %s43
      %s82 = sor.u32 %s80, %s81
      %s83 = ssub.s32 %s78, %s79
      %s84 = sor.u32 %s82, %s83
      %s85 = ssub.s32 %s22, %s35
      %s86 = sor.u32 %s84, %s85
      %p87 = scmp.eq.s32.totalorder %s86, 0
      %s89 = sadd.s32 %s88, 1
      %s90 = scalar_select %p87, %s88, %s89
      %p93 = pneg %p87
      %p94 = scmp.eq.s32.totalorder %s11, 3
      %p95 = por %p93, %p94
      %p96 = scmp.ne.s32.totalorder %s88, %s91
      %p97 = scmp.eq.s32.totalorder %s11, 0
      %p98 = por %p96, %p97
      %p99 = scmp.ne.s32.totalorder %s88, %s91
      %p100 = scmp.eq.s32.totalorder %s16, 3
      %p101 = por %p99, %p100
      %p102 = scmp.ne.s32.totalorder %s91, %s92
      %p103 = scmp.eq.s32.totalorder %s16, 0
      %p104 = por %p102, %p103
      %p105 = scmp.ne.s32.totalorder %s91, %s92
      %p106 = scmp.eq.s32.totalorder %s17, 3
      %p107 = por %p105, %p106
      %p109 = scmp.ne.s32.totalorder %s92, %s108
      %p110 = scmp.eq.s32.totalorder %s17, 0
      %p111 = por %p109, %p110
      %p112 = scmp.le.s32.totalorder 1, %s11
      %p113 = scmp.lt.s32.totalorder %s11, 5
      %p114 = pnand %p112, %p113
      %p115 = pneg %p114
      // Predicated region
      $region9: #{tpu_custom_call.1} parent=5 // pred_check
        _
      $region10: #{tpu_custom_call.1} parent=5 // pred_check_branch
        %117 = sbr.rel (%p114) target = $region12
      $region11: #{tpu_custom_call.1} parent=5 // pred_region
        %s118 = ssub.s32 %s11, 1
        // Predicated region
        $region13: #{tpu_custom_call.1} parent=11 // pred_check
          %p119 = pneg %p70
        $region14: #{tpu_custom_call.1} parent=11 // pred_check_branch
          %121 = sbr.rel (%p119) target = $region16
        $region15: #{tpu_custom_call.1} parent=11 // pred_region
          %s122 = smul.u32 2, %s23
          %s124 = ssub.s32 2048, 2048
          %125 = vsyncadd [#allocation3], %s124
          %s126 = smul.addr %s122, 128
          %s127 = scalar_lea.hbm %s0, %s126
          %s128 = sshll.u32 [#allocation2], 4
          %s129 = int_to_ptr.vmem [resolvable:$true] %s128
          %134 = dma.hbm_to_vmem [thread:$0]  %s127, 2048, %s129, [#allocation3], 128, 128, 8
        $region16: #{tpu_custom_call.1} parent=11 // pred_fallthru
          _
      $region12: #{tpu_custom_call.1} parent=5 // pred_fallthru
        _
      %p135 = scmp.lt.s32.totalorder %s11, 4
      // Predicated region
      $region17: #{tpu_custom_call.1} parent=5 // pred_check
        %p136 = pneg %p135
      $region18: #{tpu_custom_call.1} parent=5 // pred_check_branch
        %138 = sbr.rel (%p136) target = $region20
      $region19: #{tpu_custom_call.1} parent=5 // pred_region
        _
      $region20: #{tpu_custom_call.1} parent=5 // pred_fallthru
        _
      %p139 = scmp.le.s32.totalorder 1, %s11
      %p140 = scmp.lt.s32.totalorder %s11, 5
      %p141 = pnand %p139, %p140
      %p142 = pneg %p141
      // Predicated region
      $region21: #{tpu_custom_call.1} parent=5 // pred_check
        _
      $region22: #{tpu_custom_call.1} parent=5 // pred_check_branch
        %144 = sbr.rel (%p141) target = $region24
      $region23: #{tpu_custom_call.1} parent=5 // pred_region
        %s145 = ssub.s32 %s11, 1
        // Predicated region
        $region25: #{tpu_custom_call.1} parent=23 // pred_check
          %p146 = pneg %p70
        $region26: #{tpu_custom_call.1} parent=23 // pred_check_branch
          %148 = sbr.rel (%p146) target = $region28
        $region27: #{tpu_custom_call.1} parent=23 // pred_region
          %149 = dma.done [#allocation3], 2048
        $region28: #{tpu_custom_call.1} parent=23 // pred_fallthru
          _
        %p150 = pneg %p70
        %p151 = pneg %p67
        %p152 = pneg %p104
        %p153 = pneg %p101
        %s154 = sand.u32 %s91, 1
        %s155 = scalar_lea.sflag [#allocation4], %s154
        %s156 = sand.u32 %s91, 1
        %s157 = smul.addr %s156, 128
        %s158 = scalar_lea.vmem [#allocation5], %s157
        %s159 = smul.u32 2, %s23
        %s160 = sadd.s32 %s26, %s23
        %s161 = smul.u32 2, %s24
        %s162 = smul.u32 4, %s25
        %s163 = smul.u32 2, %s160
        %v164 = vld [vmem:[#allocation2] sm:$0xff]
        %v165 = vld [vmem:[#allocation2 + $0x8] sm:$0xff]
        %v166 = vld [vmem:[#allocation2 + $0x10] sm:$0xff]
        %v167 = vld [vmem:[#allocation2 + $0x18] sm:$0xff]
        %v168 = vld [vmem:[#allocation2 + $0x20] sm:$0xff]
        %v169 = vld [vmem:[#allocation2 + $0x28] sm:$0xff]
        %v170 = vld [vmem:[#allocation2 + $0x30] sm:$0xff]
        %v171 = vld [vmem:[#allocation2 + $0x38] sm:$0xff]
        %v172 = vld [vmem:[#allocation2 + $0x40] sm:$0xff]
        %v173 = vld [vmem:[#allocation2 + $0x48] sm:$0xff]
        %v174 = vld [vmem:[#allocation2 + $0x50] sm:$0xff]
        %v175 = vld [vmem:[#allocation2 + $0x58] sm:$0xff]
        %v176 = vld [vmem:[#allocation2 + $0x60] sm:$0xff]
        %v177 = vld [vmem:[#allocation2 + $0x68] sm:$0xff]
        %v178 = vld [vmem:[#allocation2 + $0x70] sm:$0xff]
        %v179 = vld [vmem:[#allocation2 + $0x78] sm:$0xff]
        %196 = vrot.lane.b32.xlu0 %v164, 16
        %v197 = vpop.permute.xlu0 %196
        %198 = vrot.lane.b32.xlu0 %v165, 16
        %v199 = vpop.permute.xlu0 %198
        %200 = vrot.lane.b32.xlu0 %v166, 16
        %v201 = vpop.permute.xlu0 %200
        %202 = vrot.lane.b32.xlu0 %v167, 16
        %v203 = vpop.permute.xlu0 %202
        %204 = vrot.lane.b32.xlu0 %v168, 16
        %v205 = vpop.permute.xlu0 %204
        %206 = vrot.lane.b32.xlu0 %v169, 16
        %v207 = vpop.permute.xlu0 %206
        %208 = vrot.lane.b32.xlu0 %v170, 16
        %v209 = vpop.permute.xlu0 %208
        %210 = vrot.lane.b32.xlu0 %v171, 16
        %v211 = vpop.permute.xlu0 %210
        %212 = vrot.lane.b32.xlu0 %v172, 16
        %v213 = vpop.permute.xlu0 %212
        %214 = vrot.lane.b32.xlu0 %v173, 16
        %v215 = vpop.permute.xlu0 %214
        %216 = vrot.lane.b32.xlu0 %v174, 16
        %v217 = vpop.permute.xlu0 %216
        %218 = vrot.lane.b32.xlu0 %v175, 16
        %v219 = vpop.permute.xlu0 %218
        %220 = vrot.lane.b32.xlu0 %v176, 16
        %v221 = vpop.permute.xlu0 %220
        %222 = vrot.lane.b32.xlu0 %v177, 16
        %v223 = vpop.permute.xlu0 %222
        %224 = vrot.lane.b32.xlu0 %v178, 16
        %v225 = vpop.permute.xlu0 %224
        %226 = vrot.lane.b32.xlu0 %v179, 16
        %v227 = vpop.permute.xlu0 %226
        %vm244 = vcmask 130048
        %v245 = vsel %vm244, %v164, %v197
        %v246 = vsel %vm244, %v165, %v199
        %v247 = vsel %vm244, %v166, %v201
        %v248 = vsel %vm244, %v167, %v203
        %v249 = vsel %vm244, %v168, %v205
        %v250 = vsel %vm244, %v169, %v207
        %v251 = vsel %vm244, %v170, %v209
        %v252 = vsel %vm244, %v171, %v211
        %v253 = vsel %vm244, %v172, %v213
        %v254 = vsel %vm244, %v173, %v215
        %v255 = vsel %vm244, %v174, %v217
        %v256 = vsel %vm244, %v175, %v219
        %v257 = vsel %vm244, %v176, %v221
        %v258 = vsel %vm244, %v177, %v223
        %v259 = vsel %vm244, %v178, %v225
        %v260 = vsel %vm244, %v179, %v227
        %vm261 = vcmask 261120
        %262 = vst.msk [vmem:[%s158] sm:$0xff] %vm261, %v245
        %263 = vst.msk [vmem:[%s158 + $0x8] sm:$0xff] %vm261, %v246
        %264 = vst.msk [vmem:[%s158 + $0x10] sm:$0xff] %vm261, %v247
        %265 = vst.msk [vmem:[%s158 + $0x18] sm:$0xff] %vm261, %v248
        %266 = vst.msk [vmem:[%s158 + $0x20] sm:$0xff] %vm261, %v249
        %267 = vst.msk [vmem:[%s158 + $0x28] sm:$0xff] %vm261, %v250
        %268 = vst.msk [vmem:[%s158 + $0x30] sm:$0xff] %vm261, %v251
        %269 = vst.msk [vmem:[%s158 + $0x38] sm:$0xff] %vm261, %v252
        %270 = vst.msk [vmem:[%s158 + $0x40] sm:$0xff] %vm261, %v253
        %271 = vst.msk [vmem:[%s158 + $0x48] sm:$0xff] %vm261, %v254
        %272 = vst.msk [vmem:[%s158 + $0x50] sm:$0xff] %vm261, %v255
        %273 = vst.msk [vmem:[%s158 + $0x58] sm:$0xff] %vm261, %v256
        %274 = vst.msk [vmem:[%s158 + $0x60] sm:$0xff] %vm261, %v257
        %275 = vst.msk [vmem:[%s158 + $0x68] sm:$0xff] %vm261, %v258
        %276 = vst.msk [vmem:[%s158 + $0x70] sm:$0xff] %vm261, %v259
        %277 = vst.msk [vmem:[%s158 + $0x78] sm:$0xff] %vm261, %v260
        %s278 = sand.u32 %s91, 1
        %s279 = scalar_lea.sflag [#allocation4], %s278
        %s280 = sand.u32 %s91, 1
        %s281 = smul.addr %s280, 128
        %s282 = scalar_lea.vmem [#allocation5], %s281
        // Predicated region
        $region29: #{tpu_custom_call.1} parent=23 // pred_check
          %p283 = pneg %p101
        $region30: #{tpu_custom_call.1} parent=23 // pred_check_branch
          %285 = sbr.rel (%p283) target = $region32
        $region31: #{tpu_custom_call.1} parent=23 // pred_region
          #allocation7 [shape = 'u32[9]{0}', space=smem, size = 0x24, scoped, tag = 'DMA stride descriptor']
          %s286 = sadd.s32 %s26, %s23
          %s287 = smul.u32 2, %s24
          %s288 = smul.u32 4, %s25
          %s289 = smul.u32 2, %s286
          %s291 = ssub.s32 2048, 2048
          %292 = vsyncadd %s279, %s291
          %s293 = sadd.s32 %s27, %s289
          %s294 = smul.addr %s288, 4
          %s295 = sadd.s32 %s293, %s294
          %s296 = smul.addr %s287, 32
          %s297 = sadd.s32 %s295, %s296
          %s298 = smul.addr %s297, 128
          %s299 = scalar_lea.hbm %s1, %s298
          %s301 = sshll.u32 1, 14
          %s302 = sxor.u32 4294967295, %s301
          %s305 = sshll.u32 7, 18
          %s306 = sxor.u32 4294967295, %s305
          %s307 = sand.u32 0, %s306
          %s309 = sor.u32 %s307, 0
          %s310 = sshll.u32 %s282, 4
          %s311 = int_to_ptr.vmem [resolvable:$true] %s310
          %319 = sst [smem:[#allocation7]] 1024
          %s320 = scalar_lea.smem [#allocation7], 1
          %321 = sst [smem:[%s320]] 4096
          %s322 = scalar_lea.smem [#allocation7], 2
          %323 = sst [smem:[%s322]] 4
          %s324 = scalar_lea.smem [#allocation7], 3
          %325 = sst [smem:[%s324]] 256
          %s326 = scalar_lea.smem [#allocation7], 4
          %327 = sst [smem:[%s326]] 512
          %s328 = scalar_lea.smem [#allocation7], 5
          %329 = sst [smem:[%s328]] 2
          %s330 = scalar_lea.smem [#allocation7], 6
          %331 = sst [smem:[%s330]] 128
          %s332 = scalar_lea.smem [#allocation7], 7
          %333 = sst [smem:[%s332]] 128
          %s334 = scalar_lea.smem [#allocation7], 8
          %335 = sst [smem:[%s334]] 8
          %337 = dma.general %s311, 2048, %s299, %s279, 131072, [#allocation7], %s309, 0
        $region32: #{tpu_custom_call.1} parent=23 // pred_fallthru
          _
      $region24: #{tpu_custom_call.1} parent=5 // pred_fallthru
        _
      %p338 = scmp.le.s32.totalorder 2, %s11
      // Predicated region
      $region33: #{tpu_custom_call.1} parent=5 // pred_check
        %p339 = pneg %p338
      $region34: #{tpu_custom_call.1} parent=5 // pred_check_branch
        %341 = sbr.rel (%p339) target = $region36
      $region35: #{tpu_custom_call.1} parent=5 // pred_region
        %s342 = ssub.s32 %s11, 2
        // Predicated region
        $region37: #{tpu_custom_call.1} parent=35 // pred_check
          %p343 = pneg %p107
        $region38: #{tpu_custom_call.1} parent=35 // pred_check_branch
          %345 = sbr.rel (%p343) target = $region40
        $region39: #{tpu_custom_call.1} parent=35 // pred_region
          %s346 = sand.u32 %s92, 1
          %s347 = scalar_lea.sflag [#allocation4], %s346
          %s348 = sand.u32 %s92, 1
          %s349 = smul.addr %s348, 128
          %s350 = scalar_lea.vmem [#allocation5], %s349
          %351 = dma.done %s347, 2048
        $region40: #{tpu_custom_call.1} parent=35 // pred_fallthru
          _
      $region36: #{tpu_custom_call.1} parent=5 // pred_fallthru
        _
    $region6: #{tpu_custom_call.1} parent=1 // loop_footer
      %s15 = sadd.s32 1, %s11
    $region7: #{tpu_custom_call.1} parent=1 // loop_footer_branch
      %10 = sbr.rel target = $region3
    $region8: #{tpu_custom_call.1} parent=1 // loop_exit
      _
    %352 = vsyncpa [#allocation3], 1
    %s353 = scalar_lea.sflag [#allocation3], 1
    %354 = vsyncpa %s353, 1
    %355 = vsyncpa [#allocation4], 1
    %s356 = scalar_lea.sflag [#allocation4], 1
    %357 = vsyncpa %s356, 1

</llo_original>
